<compile_context>
chip_gen: v5e
topology: v5e:2x2
jax: 0.10.0
libtpu: 0.0.40
codegen_flags: <defaults>
</compile_context>

<pallas_src>
from functools import partial

import jax
import jax.numpy as jnp
from jax import lax
from jax.experimental import pallas as pl
from jax.experimental.pallas import tpu as pltpu

HIDS = [3, 1]               # FrameWiseHGNN default: a single HGNN_conv(3, 1)
CLASS_NUM = 8
N_NODES = HIDS[0]           # G is (N, N) and is also the layer input -> N == hids[0]
_LANES = 128
_SUBLANES = 8
_MIN_TILE = _SUBLANES * _LANES     # 1024 samples = one (8, 128) f32 vreg
_BATCH_TILE_TARGET = 65536         # samples per grid step (review: 16K-64K)


# ---------------------------------------------------------------------------
# Pallas kernel: fused gen_G + HGNN_conv(3, 1) + node-max for one batch tile,
# batch folded onto (sublane, lane).  All contractions are over 3 nodes /
# 3 coords / 1 hidden unit and are unrolled as VPU broadcast multiply-adds.
# TODO(synk): construct_H_with_KNN / generate_G_from_H sources were not given;
# this follows the standard HGNN KNN-hypergraph construction (probabilistic
# incidence + G = Dv^-1/2 H W De^-1 H^T Dv^-1/2 with W = I).  Since
# K_neigs = 3 == n_nodes, the KNN selection keeps every node and the argsort
# of the original construction reduces exactly to the closed form below.
# ---------------------------------------------------------------------------
def _framewise_hgnn_kernel(x_ref, par_ref, out_ref):
    """x_ref  : (9, tbs, 128) f32 VMEM -- x_ref[3*i + c] = coord c of node i,
                batch folded onto (sublane, lane).
       par_ref: (4,) f32 SMEM -- [w1_0, w1_1, w1_2, b1] of HGNN_conv(3, 1).
       out_ref: (tbs, 128) f32 VMEM -- per-sample max over nodes of the HGNN
                feature (hidden size 1); Linear(1, C) is applied outside."""
    w0 = par_ref[0]
    w1 = par_ref[1]
    w2 = par_ref[2]
    b1 = par_ref[3]

    n_chunks = x_ref.shape[1] // _SUBLANES          # static Python int

    def chunk_body(ci, carry):
        r0 = pl.multiple_of(ci * _SUBLANES, _SUBLANES)
        rows = pl.ds(r0, _SUBLANES)
        p = [x_ref[k, rows, :] for k in range(3 * N_NODES)]   # nine (8,128) planes

        # pairwise squared distances (symmetric, zero diagonal -> 3 unique)
        def sqd(i, j):
            dx = p[3 * i] - p[3 * j]
            dy = p[3 * i + 1] - p[3 * j + 1]
            dz = p[3 * i + 2] - p[3 * j + 2]
            return dx * dx + dy * dy + dz * dz

        d2_01 = sqd(0, 1)
        d2_02 = sqd(0, 2)
        d2_12 = sqd(1, 2)
        d2 = [[None, d2_01, d2_02],
              [d2_01, None, d2_12],
              [d2_02, d2_12, None]]

        # mean distance of each hyperedge (centered at node c); sqrt is only
        # needed for the mean -- H below reuses d2 directly.
        d01 = jnp.sqrt(d2_01)
        d02 = jnp.sqrt(d2_02)
        d12 = jnp.sqrt(d2_12)
        third = 1.0 / 3.0
        avg = [(d01 + d02) * third, (d01 + d12) * third, (d02 + d12) * third]
        # one exact reciprocal per hyperedge (kept exact: it feeds the exp arg)
        inv_a2 = [1.0 / (a * a + 1e-12) for a in avg]

        # probabilistic incidence H[v][c] (is_probH, m_prob = 1);
        # diagonal is exp(0) == 1 exactly -> constant, 6 exps instead of 9.
        H = [[1.0,
              jnp.exp(-d2[0][1] * inv_a2[1]),
              jnp.exp(-d2[0][2] * inv_a2[2])],
             [jnp.exp(-d2[1][0] * inv_a2[0]),
              1.0,
              jnp.exp(-d2[1][2] * inv_a2[2])],
             [jnp.exp(-d2[2][0] * inv_a2[0]),
              jnp.exp(-d2[2][1] * inv_a2[1]),
              1.0]]

        # vertex / edge degrees; G = Dv^-1/2 H De^-1 H^T Dv^-1/2 (W = identity)
        DV = [H[v][0] + H[v][1] + H[v][2] for v in range(3)]
        DE = [H[0][c] + H[1][c] + H[2][c] for c in range(3)]
        # TODO(synk): pl.reciprocal(..., approx=True) would co-issue on the EUP
        # but its error compounds through two applications of G; kept exact so
        # the 1e-3 correctness check holds (per review's correctness concern).
        inv_de = [pl.reciprocal(DE[c]) for c in range(3)]
        dvi = [lax.rsqrt(DV[v]) for v in range(3)]            # EUP rsqrt

        def g_entry(i, j):                 # G is symmetric: 6 unique entries
            s = (H[i][0] * H[j][0] * inv_de[0]
                 + H[i][1] * H[j][1] * inv_de[1]
                 + H[i][2] * H[j][2] * inv_de[2])
            return (dvi[i] * dvi[j]) * s

        G00, G01, G02 = g_entry(0, 0), g_entry(0, 1), g_entry(0, 2)
        G11, G12, G22 = g_entry(1, 1), g_entry(1, 2), g_entry(2, 2)
        G = [[G00, G01, G02], [G01, G11, G12], [G02, G12, G22]]

        # HGNN_conv(3, 1) called as L(f_in, f_in): h = G @ (G @ w + b)
        hmid = [G[i][0] * w0 + G[i][1] * w1 + G[i][2] * w2 + b1 for i in range(3)]
        h = [G[i][0] * hmid[0] + G[i][1] * hmid[1] + G[i][2] * hmid[2]
             for i in range(3)]

        # f_in.max(1)[0]: max over the node axis (hidden size is 1)
        out_ref[rows, :] = jnp.maximum(jnp.maximum(h[0], h[1]), h[2])
        return carry

    unroll = 2 if n_chunks % 2 == 0 else 1
    lax.fori_loop(0, n_chunks, chunk_body, 0, unroll=unroll)


def _cdiv(a, b):
    return -(-a // b)


def _pick_tiling(batch, target):
    """(samples per grid step, number of grid steps).

    Blocks are grown toward `target` to amortize per-step pipeline overhead,
    but the grid keeps >= 2 'parallel' steps when the batch allows it so both
    v7x TensorCores (and the v5e/v6e megacore halves) get work; padding waste
    stays small because the tile is derived from ceil(B / n_steps)."""
    if batch <= _MIN_TILE:
        return _MIN_TILE, 1
    n_steps = max(2, _cdiv(batch, target))
    tile = _cdiv(_cdiv(batch, n_steps), _MIN_TILE) * _MIN_TILE
    return tile, _cdiv(batch, tile)


@partial(jax.jit, static_argnames=("batch_tile_target",))
def framewise_hgnn_forward(x, params, *, batch_tile_target=_BATCH_TILE_TARGET):
    """x: (B, T, N, 3) float; returns (B, CLASS_NUM) float32 logits."""
    w1, b1, wc, bc = params
    B = x.shape[0]
    n = x.shape[2]
    assert n == N_NODES and x.shape[3] == 3
    c_num = wc.shape[1]

    tile, n_steps = _pick_tiling(B, batch_tile_target)
    b_pad = tile * n_steps
    tbs = tile // _LANES            # sublane rows per grid step
    s_rows = b_pad // _LANES        # total sublane rows

    # Only the last "ft" of each sample survives the PyTorch gen_G loop.  The
    # strided last-frame slice + pad + transpose fuse (under jit) into a single
    # XLA copy producing the lane-dense (9, S, 128) operand; natural
    # (B, ..., 3, 3) layout would put 3-wide dims on the lanes (VMEM/VPU poison).
    pts = x[:, -1].astype(jnp.float32).reshape(B, 3 * n)        # (B, 9)
    pts = jnp.pad(pts, ((0, b_pad - B), (0, 0)))                # zero pads are benign
    x_t = pts.T.reshape(3 * n, s_rows, _LANES)                  # (9, S, 128)

    # HGNN_conv(3, 1) parameters as 4 SMEM scalars
    par = jnp.concatenate(
        [w1.reshape(-1), b1.reshape(-1)]).astype(jnp.float32)   # (4,)

    m = pl.pallas_call(
        _framewise_hgnn_kernel,
        out_shape=jax.ShapeDtypeStruct((s_rows, _LANES), jnp.float32),
        grid_spec=pltpu.PrefetchScalarGridSpec(
            num_scalar_prefetch=0,
            grid=(n_steps,),
            in_specs=[
                pl.BlockSpec((3 * n, tbs, _LANES), lambda g: (0, g, 0)),
                pl.BlockSpec(memory_space=pltpu.MemorySpace.SMEM),
            ],
            out_specs=pl.BlockSpec((tbs, _LANES), lambda g: (g, 0)),
        ),
        compiler_params=pltpu.CompilerParams(
            dimension_semantics=("parallel",)),
        cost_estimate=pl.CostEstimate(
            flops=180 * b_pad,
            transcendentals=12 * b_pad,
            bytes_accessed=(3 * n + 1) * 4 * b_pad),
    )(x_t, par)

    # (S, 128) -> (b_pad, 1) is a pure reshape (no HBM pass); the rank-1
    # classifier Linear(1, C) is one fused broadcast-multiply-add that writes
    # the logits directly in (B, C) layout -- no output transpose pass.
    m_col = m.reshape(b_pad, 1)[:B]
    return (m_col * wc.reshape(1, c_num).astype(jnp.float32)
            + bc.reshape(1, c_num).astype(jnp.float32))


def init_params(key):
    k1, k2, k3, k4 = jax.random.split(key, 4)
    in_ft, out_ft = HIDS[0], HIDS[1]
    stdv = 1.0 / (out_ft ** 0.5)                                 # HGNN_conv init
    w1 = jax.random.uniform(k1, (in_ft, out_ft), jnp.float32, -stdv, stdv)
    b1 = jax.random.uniform(k2, (1, out_ft), jnp.float32, -stdv, stdv)
    bound = 1.0 / (out_ft ** 0.5)                                # nn.Linear init
    wc = jax.random.uniform(k3, (out_ft, CLASS_NUM), jnp.float32, -bound, bound)
    bc = jax.random.uniform(k4, (1, CLASS_NUM), jnp.float32, -bound, bound)
    return w1, b1, wc, bc


# ---------------------------------------------------------------------------
# Pure-JAX reference (same gen_G reconstruction) for correctness checking.
# ---------------------------------------------------------------------------
def _gen_G_single(pts):
    diff = pts[:, None, :] - pts[None, :, :]
    dis = jnp.sqrt(jnp.sum(diff * diff, axis=-1))               # symmetric, zero diag
    avg = jnp.mean(dis, axis=1)
    H = jnp.exp(-(dis ** 2) / (avg[:, None] ** 2 + 1e-12)).T    # H[node, edge=center]
    DV = jnp.sum(H, axis=1)
    DE = jnp.sum(H, axis=0)
    dvi = 1.0 / jnp.sqrt(DV)
    M = jnp.einsum("ic,jc->ij", H * (1.0 / DE)[None, :], H,
                   precision=lax.Precision.HIGHEST)
    return (dvi[:, None] * dvi[None, :]) * M


def gen_G(x):
    return jax.vmap(_gen_G_single)(x[:, -1].astype(jnp.float32))


def reference_forward(x, params):
    w1, b1, wc, bc = params
    G = gen_G(x)
    h = jnp.einsum("bij,jk->bik", G, w1, precision=lax.Precision.HIGHEST) + b1
    h = jnp.einsum("bij,bjk->bik", G, h, precision=lax.Precision.HIGHEST)
    m = jnp.max(h, axis=1)                                      # (B, 1)
    return jnp.einsum("bk,kc->bc", m, wc, precision=lax.Precision.HIGHEST) + bc


if __name__ == "__main__":
    key = jax.random.PRNGKey(0)
    kx, kp = jax.random.split(key)
    B, T = 2, 4
    # x: (B samples, T "ft" items per sample, N points, 3 coords)
    x = jax.random.normal(kx, (B, T, N_NODES, 3), dtype=jnp.float32)
    params = init_params(kp)

    out = jax.block_until_ready(framewise_hgnn_forward(x, params))
    ref = reference_forward(x, params)
    assert out.shape == (B, CLASS_NUM)
    assert jnp.allclose(out, ref, atol=1e-3, rtol=1e-3)

    # larger batch: exercises batch padding and a 2-step "parallel" grid
    xb = jax.random.normal(jax.random.PRNGKey(1), (1500, 2, N_NODES, 3),
                           dtype=jnp.float32)
    outb = jax.block_until_ready(framewise_hgnn_forward(xb, params))
    refb = reference_forward(xb, params)
    assert outb.shape == (1500, CLASS_NUM)
    assert jnp.allclose(outb, refb, atol=1e-3, rtol=1e-3)

    print("KERNEL_OK")
</pallas_src>

<mosaic_0001>
module attributes {stable_mosaic.version = 11 : i64} {
  func.func @_framewise_hgnn_kernel(%arg0: i32, %arg1: memref<9x8x128xf32, #tpu.memory_space<vmem>>, %arg2: memref<4xf32, #tpu.memory_space<smem>>, %arg3: memref<8x128xf32, #tpu.memory_space<vmem>>) attributes {dimension_semantics = [#tpu.dimension_semantics<parallel>], iteration_bounds = array<i64: 1>, scalar_prefetch = 0 : i64, scratch_operands = 0 : i64, tpu.core_type = #tpu.core_type<tc>, window_params = [{transform_indices = @transform_0, window_bounds = array<i64: 9, 8, 128>}, {transform_indices = @transform_1, window_bounds = array<i64: 4>}, {transform_indices = @transform_2, window_bounds = array<i64: 8, 128>}]} {
    %c0 = arith.constant 0 : index
    %0 = memref.load %arg2[%c0] : memref<4xf32, #tpu.memory_space<smem>>
    %c1 = arith.constant 1 : index
    %1 = memref.load %arg2[%c1] : memref<4xf32, #tpu.memory_space<smem>>
    %c2 = arith.constant 2 : index
    %2 = memref.load %arg2[%c2] : memref<4xf32, #tpu.memory_space<smem>>
    %c3 = arith.constant 3 : index
    %3 = memref.load %arg2[%c3] : memref<4xf32, #tpu.memory_space<smem>>
    %c0_i32 = arith.constant 0 : i32
    %c8_i32 = arith.constant 8 : i32
    %4 = arith.muli %c0_i32, %c8_i32 : i32
    %5 = tpu.assume_multiple %4, 8 : i32
    %c0_0 = arith.constant 0 : index
    %6 = arith.index_cast %5 : i32 to index
    %c0_1 = arith.constant 0 : index
    %7 = vector.load %arg1[%c0_0, %6, %c0_1] : memref<9x8x128xf32, #tpu.memory_space<vmem>>, vector<1x8x128xf32>
    %8 = vector.shape_cast %7 : vector<1x8x128xf32> to vector<8x128xf32>
    %c1_2 = arith.constant 1 : index
    %9 = arith.index_cast %5 : i32 to index
    %c0_3 = arith.constant 0 : index
    %10 = vector.load %arg1[%c1_2, %9, %c0_3] : memref<9x8x128xf32, #tpu.memory_space<vmem>>, vector<1x8x128xf32>
    %11 = vector.shape_cast %10 : vector<1x8x128xf32> to vector<8x128xf32>
    %c2_4 = arith.constant 2 : index
    %12 = arith.index_cast %5 : i32 to index
    %c0_5 = arith.constant 0 : index
    %13 = vector.load %arg1[%c2_4, %12, %c0_5] : memref<9x8x128xf32, #tpu.memory_space<vmem>>, vector<1x8x128xf32>
    %14 = vector.shape_cast %13 : vector<1x8x128xf32> to vector<8x128xf32>
    %c3_6 = arith.constant 3 : index
    %15 = arith.index_cast %5 : i32 to index
    %c0_7 = arith.constant 0 : index
    %16 = vector.load %arg1[%c3_6, %15, %c0_7] : memref<9x8x128xf32, #tpu.memory_space<vmem>>, vector<1x8x128xf32>
    %17 = vector.shape_cast %16 : vector<1x8x128xf32> to vector<8x128xf32>
    %c4 = arith.constant 4 : index
    %18 = arith.index_cast %5 : i32 to index
    %c0_8 = arith.constant 0 : index
    %19 = vector.load %arg1[%c4, %18, %c0_8] : memref<9x8x128xf32, #tpu.memory_space<vmem>>, vector<1x8x128xf32>
    %20 = vector.shape_cast %19 : vector<1x8x128xf32> to vector<8x128xf32>
    %c5 = arith.constant 5 : index
    %21 = arith.index_cast %5 : i32 to index
    %c0_9 = arith.constant 0 : index
    %22 = vector.load %arg1[%c5, %21, %c0_9] : memref<9x8x128xf32, #tpu.memory_space<vmem>>, vector<1x8x128xf32>
    %23 = vector.shape_cast %22 : vector<1x8x128xf32> to vector<8x128xf32>
    %c6 = arith.constant 6 : index
    %24 = arith.index_cast %5 : i32 to index
    %c0_10 = arith.constant 0 : index
    %25 = vector.load %arg1[%c6, %24, %c0_10] : memref<9x8x128xf32, #tpu.memory_space<vmem>>, vector<1x8x128xf32>
    %26 = vector.shape_cast %25 : vector<1x8x128xf32> to vector<8x128xf32>
    %c7 = arith.constant 7 : index
    %27 = arith.index_cast %5 : i32 to index
    %c0_11 = arith.constant 0 : index
    %28 = vector.load %arg1[%c7, %27, %c0_11] : memref<9x8x128xf32, #tpu.memory_space<vmem>>, vector<1x8x128xf32>
    %29 = vector.shape_cast %28 : vector<1x8x128xf32> to vector<8x128xf32>
    %c8 = arith.constant 8 : index
    %30 = arith.index_cast %5 : i32 to index
    %c0_12 = arith.constant 0 : index
    %31 = vector.load %arg1[%c8, %30, %c0_12] : memref<9x8x128xf32, #tpu.memory_space<vmem>>, vector<1x8x128xf32>
    %32 = vector.shape_cast %31 : vector<1x8x128xf32> to vector<8x128xf32>
    %33 = arith.subf %8, %17 : vector<8x128xf32>
    %34 = arith.subf %11, %20 : vector<8x128xf32>
    %35 = arith.subf %14, %23 : vector<8x128xf32>
    %36 = arith.mulf %33, %33 : vector<8x128xf32>
    %37 = arith.mulf %34, %34 : vector<8x128xf32>
    %38 = arith.addf %36, %37 : vector<8x128xf32>
    %39 = arith.mulf %35, %35 : vector<8x128xf32>
    %40 = arith.addf %38, %39 : vector<8x128xf32>
    %41 = arith.subf %8, %26 : vector<8x128xf32>
    %42 = arith.subf %11, %29 : vector<8x128xf32>
    %43 = arith.subf %14, %32 : vector<8x128xf32>
    %44 = arith.mulf %41, %41 : vector<8x128xf32>
    %45 = arith.mulf %42, %42 : vector<8x128xf32>
    %46 = arith.addf %44, %45 : vector<8x128xf32>
    %47 = arith.mulf %43, %43 : vector<8x128xf32>
    %48 = arith.addf %46, %47 : vector<8x128xf32>
    %49 = arith.subf %17, %26 : vector<8x128xf32>
    %50 = arith.subf %20, %29 : vector<8x128xf32>
    %51 = arith.subf %23, %32 : vector<8x128xf32>
    %52 = arith.mulf %49, %49 : vector<8x128xf32>
    %53 = arith.mulf %50, %50 : vector<8x128xf32>
    %54 = arith.addf %52, %53 : vector<8x128xf32>
    %55 = arith.mulf %51, %51 : vector<8x128xf32>
    %56 = arith.addf %54, %55 : vector<8x128xf32>
    %57 = math.sqrt %40 : vector<8x128xf32>
    %58 = math.sqrt %48 : vector<8x128xf32>
    %59 = math.sqrt %56 : vector<8x128xf32>
    %60 = arith.addf %57, %58 : vector<8x128xf32>
    %cst = arith.constant 0.333333343 : f32
    %61 = vector.broadcast %cst : f32 to vector<8x128xf32>
    %62 = arith.mulf %60, %61 : vector<8x128xf32>
    %63 = arith.addf %57, %59 : vector<8x128xf32>
    %cst_13 = arith.constant 0.333333343 : f32
    %64 = vector.broadcast %cst_13 : f32 to vector<8x128xf32>
    %65 = arith.mulf %63, %64 : vector<8x128xf32>
    %66 = arith.addf %58, %59 : vector<8x128xf32>
    %cst_14 = arith.constant 0.333333343 : f32
    %67 = vector.broadcast %cst_14 : f32 to vector<8x128xf32>
    %68 = arith.mulf %66, %67 : vector<8x128xf32>
    %69 = arith.mulf %62, %62 : vector<8x128xf32>
    %cst_15 = arith.constant 9.99999996E-13 : f32
    %70 = vector.broadcast %cst_15 : f32 to vector<8x128xf32>
    %71 = arith.addf %69, %70 : vector<8x128xf32>
    %cst_16 = arith.constant 1.000000e+00 : f32
    %72 = vector.broadcast %cst_16 : f32 to vector<8x128xf32>
    %73 = arith.divf %72, %71 : vector<8x128xf32>
    %74 = arith.mulf %65, %65 : vector<8x128xf32>
    %cst_17 = arith.constant 9.99999996E-13 : f32
    %75 = vector.broadcast %cst_17 : f32 to vector<8x128xf32>
    %76 = arith.addf %74, %75 : vector<8x128xf32>
    %cst_18 = arith.constant 1.000000e+00 : f32
    %77 = vector.broadcast %cst_18 : f32 to vector<8x128xf32>
    %78 = arith.divf %77, %76 : vector<8x128xf32>
    %79 = arith.mulf %68, %68 : vector<8x128xf32>
    %cst_19 = arith.constant 9.99999996E-13 : f32
    %80 = vector.broadcast %cst_19 : f32 to vector<8x128xf32>
    %81 = arith.addf %79, %80 : vector<8x128xf32>
    %cst_20 = arith.constant 1.000000e+00 : f32
    %82 = vector.broadcast %cst_20 : f32 to vector<8x128xf32>
    %83 = arith.divf %82, %81 : vector<8x128xf32>
    %cst_21 = arith.constant 0.000000e+00 : f32
    %84 = vector.broadcast %cst_21 : f32 to vector<8x128xf32>
    %85 = arith.subf %84, %40 : vector<8x128xf32>
    %86 = arith.mulf %85, %78 : vector<8x128xf32>
    %87 = math.exp %86 : vector<8x128xf32>
    %cst_22 = arith.constant 0.000000e+00 : f32
    %88 = vector.broadcast %cst_22 : f32 to vector<8x128xf32>
    %89 = arith.subf %88, %48 : vector<8x128xf32>
    %90 = arith.mulf %89, %83 : vector<8x128xf32>
    %91 = math.exp %90 : vector<8x128xf32>
    %cst_23 = arith.constant 0.000000e+00 : f32
    %92 = vector.broadcast %cst_23 : f32 to vector<8x128xf32>
    %93 = arith.subf %92, %40 : vector<8x128xf32>
    %94 = arith.mulf %93, %73 : vector<8x128xf32>
    %95 = math.exp %94 : vector<8x128xf32>
    %cst_24 = arith.constant 0.000000e+00 : f32
    %96 = vector.broadcast %cst_24 : f32 to vector<8x128xf32>
    %97 = arith.subf %96, %56 : vector<8x128xf32>
    %98 = arith.mulf %97, %83 : vector<8x128xf32>
    %99 = math.exp %98 : vector<8x128xf32>
    %cst_25 = arith.constant 0.000000e+00 : f32
    %100 = vector.broadcast %cst_25 : f32 to vector<8x128xf32>
    %101 = arith.subf %100, %48 : vector<8x128xf32>
    %102 = arith.mulf %101, %73 : vector<8x128xf32>
    %103 = math.exp %102 : vector<8x128xf32>
    %cst_26 = arith.constant 0.000000e+00 : f32
    %104 = vector.broadcast %cst_26 : f32 to vector<8x128xf32>
    %105 = arith.subf %104, %56 : vector<8x128xf32>
    %106 = arith.mulf %105, %78 : vector<8x128xf32>
    %107 = math.exp %106 : vector<8x128xf32>
    %cst_27 = arith.constant 1.000000e+00 : f32
    %108 = vector.broadcast %cst_27 : f32 to vector<8x128xf32>
    %109 = arith.addf %108, %87 : vector<8x128xf32>
    %110 = arith.addf %109, %91 : vector<8x128xf32>
    %cst_28 = arith.constant 1.000000e+00 : f32
    %111 = vector.broadcast %cst_28 : f32 to vector<8x128xf32>
    %112 = arith.addf %95, %111 : vector<8x128xf32>
    %113 = arith.addf %112, %99 : vector<8x128xf32>
    %114 = arith.addf %103, %107 : vector<8x128xf32>
    %cst_29 = arith.constant 1.000000e+00 : f32
    %115 = vector.broadcast %cst_29 : f32 to vector<8x128xf32>
    %116 = arith.addf %114, %115 : vector<8x128xf32>
    %cst_30 = arith.constant 1.000000e+00 : f32
    %117 = vector.broadcast %cst_30 : f32 to vector<8x128xf32>
    %118 = arith.addf %117, %95 : vector<8x128xf32>
    %119 = arith.addf %118, %103 : vector<8x128xf32>
    %cst_31 = arith.constant 1.000000e+00 : f32
    %120 = vector.broadcast %cst_31 : f32 to vector<8x128xf32>
    %121 = arith.addf %87, %120 : vector<8x128xf32>
    %122 = arith.addf %121, %107 : vector<8x128xf32>
    %123 = arith.addf %91, %99 : vector<8x128xf32>
    %cst_32 = arith.constant 1.000000e+00 : f32
    %124 = vector.broadcast %cst_32 : f32 to vector<8x128xf32>
    %125 = arith.addf %123, %124 : vector<8x128xf32>
    %126 = tpu.reciprocal %119 : vector<8x128xf32> -> vector<8x128xf32>
    %127 = tpu.reciprocal %122 : vector<8x128xf32> -> vector<8x128xf32>
    %128 = tpu.reciprocal %125 : vector<8x128xf32> -> vector<8x128xf32>
    %129 = math.rsqrt %110 : vector<8x128xf32>
    %130 = math.rsqrt %113 : vector<8x128xf32>
    %131 = math.rsqrt %116 : vector<8x128xf32>
    %cst_33 = arith.constant 1.000000e+00 : f32
    %132 = vector.broadcast %cst_33 : f32 to vector<8x128xf32>
    %133 = arith.mulf %132, %126 : vector<8x128xf32>
    %134 = arith.mulf %87, %87 : vector<8x128xf32>
    %135 = arith.mulf %134, %127 : vector<8x128xf32>
    %136 = arith.addf %133, %135 : vector<8x128xf32>
    %137 = arith.mulf %91, %91 : vector<8x128xf32>
    %138 = arith.mulf %137, %128 : vector<8x128xf32>
    %139 = arith.addf %136, %138 : vector<8x128xf32>
    %140 = arith.mulf %129, %129 : vector<8x128xf32>
    %141 = arith.mulf %140, %139 : vector<8x128xf32>
    %cst_34 = arith.constant 1.000000e+00 : f32
    %142 = vector.broadcast %cst_34 : f32 to vector<8x128xf32>
    %143 = arith.mulf %142, %95 : vector<8x128xf32>
    %144 = arith.mulf %143, %126 : vector<8x128xf32>
    %cst_35 = arith.constant 1.000000e+00 : f32
    %145 = vector.broadcast %cst_35 : f32 to vector<8x128xf32>
    %146 = arith.mulf %87, %145 : vector<8x128xf32>
    %147 = arith.mulf %146, %127 : vector<8x128xf32>
    %148 = arith.addf %144, %147 : vector<8x128xf32>
    %149 = arith.mulf %91, %99 : vector<8x128xf32>
    %150 = arith.mulf %149, %128 : vector<8x128xf32>
    %151 = arith.addf %148, %150 : vector<8x128xf32>
    %152 = arith.mulf %129, %130 : vector<8x128xf32>
    %153 = arith.mulf %152, %151 : vector<8x128xf32>
    %cst_36 = arith.constant 1.000000e+00 : f32
    %154 = vector.broadcast %cst_36 : f32 to vector<8x128xf32>
    %155 = arith.mulf %154, %103 : vector<8x128xf32>
    %156 = arith.mulf %155, %126 : vector<8x128xf32>
    %157 = arith.mulf %87, %107 : vector<8x128xf32>
    %158 = arith.mulf %157, %127 : vector<8x128xf32>
    %159 = arith.addf %156, %158 : vector<8x128xf32>
    %cst_37 = arith.constant 1.000000e+00 : f32
    %160 = vector.broadcast %cst_37 : f32 to vector<8x128xf32>
    %161 = arith.mulf %91, %160 : vector<8x128xf32>
    %162 = arith.mulf %161, %128 : vector<8x128xf32>
    %163 = arith.addf %159, %162 : vector<8x128xf32>
    %164 = arith.mulf %129, %131 : vector<8x128xf32>
    %165 = arith.mulf %164, %163 : vector<8x128xf32>
    %166 = arith.mulf %95, %95 : vector<8x128xf32>
    %167 = arith.mulf %166, %126 : vector<8x128xf32>
    %cst_38 = arith.constant 1.000000e+00 : f32
    %168 = vector.broadcast %cst_38 : f32 to vector<8x128xf32>
    %169 = arith.mulf %168, %127 : vector<8x128xf32>
    %170 = arith.addf %167, %169 : vector<8x128xf32>
    %171 = arith.mulf %99, %99 : vector<8x128xf32>
    %172 = arith.mulf %171, %128 : vector<8x128xf32>
    %173 = arith.addf %170, %172 : vector<8x128xf32>
    %174 = arith.mulf %130, %130 : vector<8x128xf32>
    %175 = arith.mulf %174, %173 : vector<8x128xf32>
    %176 = arith.mulf %95, %103 : vector<8x128xf32>
    %177 = arith.mulf %176, %126 : vector<8x128xf32>
    %cst_39 = arith.constant 1.000000e+00 : f32
    %178 = vector.broadcast %cst_39 : f32 to vector<8x128xf32>
    %179 = arith.mulf %178, %107 : vector<8x128xf32>
    %180 = arith.mulf %179, %127 : vector<8x128xf32>
    %181 = arith.addf %177, %180 : vector<8x128xf32>
    %cst_40 = arith.constant 1.000000e+00 : f32
    %182 = vector.broadcast %cst_40 : f32 to vector<8x128xf32>
    %183 = arith.mulf %99, %182 : vector<8x128xf32>
    %184 = arith.mulf %183, %128 : vector<8x128xf32>
    %185 = arith.addf %181, %184 : vector<8x128xf32>
    %186 = arith.mulf %130, %131 : vector<8x128xf32>
    %187 = arith.mulf %186, %185 : vector<8x128xf32>
    %188 = arith.mulf %103, %103 : vector<8x128xf32>
    %189 = arith.mulf %188, %126 : vector<8x128xf32>
    %190 = arith.mulf %107, %107 : vector<8x128xf32>
    %191 = arith.mulf %190, %127 : vector<8x128xf32>
    %192 = arith.addf %189, %191 : vector<8x128xf32>
    %cst_41 = arith.constant 1.000000e+00 : f32
    %193 = vector.broadcast %cst_41 : f32 to vector<8x128xf32>
    %194 = arith.mulf %193, %128 : vector<8x128xf32>
    %195 = arith.addf %192, %194 : vector<8x128xf32>
    %196 = arith.mulf %131, %131 : vector<8x128xf32>
    %197 = arith.mulf %196, %195 : vector<8x128xf32>
    %198 = vector.broadcast %0 : f32 to vector<8x128xf32>
    %199 = arith.mulf %141, %198 : vector<8x128xf32>
    %200 = vector.broadcast %1 : f32 to vector<8x128xf32>
    %201 = arith.mulf %153, %200 : vector<8x128xf32>
    %202 = arith.addf %199, %201 : vector<8x128xf32>
    %203 = vector.broadcast %2 : f32 to vector<8x128xf32>
    %204 = arith.mulf %165, %203 : vector<8x128xf32>
    %205 = arith.addf %202, %204 : vector<8x128xf32>
    %206 = vector.broadcast %3 : f32 to vector<8x128xf32>
    %207 = arith.addf %205, %206 : vector<8x128xf32>
    %208 = vector.broadcast %0 : f32 to vector<8x128xf32>
    %209 = arith.mulf %153, %208 : vector<8x128xf32>
    %210 = vector.broadcast %1 : f32 to vector<8x128xf32>
    %211 = arith.mulf %175, %210 : vector<8x128xf32>
    %212 = arith.addf %209, %211 : vector<8x128xf32>
    %213 = vector.broadcast %2 : f32 to vector<8x128xf32>
    %214 = arith.mulf %187, %213 : vector<8x128xf32>
    %215 = arith.addf %212, %214 : vector<8x128xf32>
    %216 = vector.broadcast %3 : f32 to vector<8x128xf32>
    %217 = arith.addf %215, %216 : vector<8x128xf32>
    %218 = vector.broadcast %0 : f32 to vector<8x128xf32>
    %219 = arith.mulf %165, %218 : vector<8x128xf32>
    %220 = vector.broadcast %1 : f32 to vector<8x128xf32>
    %221 = arith.mulf %187, %220 : vector<8x128xf32>
    %222 = arith.addf %219, %221 : vector<8x128xf32>
    %223 = vector.broadcast %2 : f32 to vector<8x128xf32>
    %224 = arith.mulf %197, %223 : vector<8x128xf32>
    %225 = arith.addf %222, %224 : vector<8x128xf32>
    %226 = vector.broadcast %3 : f32 to vector<8x128xf32>
    %227 = arith.addf %225, %226 : vector<8x128xf32>
    %228 = arith.mulf %141, %207 : vector<8x128xf32>
    %229 = arith.mulf %153, %217 : vector<8x128xf32>
    %230 = arith.addf %228, %229 : vector<8x128xf32>
    %231 = arith.mulf %165, %227 : vector<8x128xf32>
    %232 = arith.addf %230, %231 : vector<8x128xf32>
    %233 = arith.mulf %153, %207 : vector<8x128xf32>
    %234 = arith.mulf %175, %217 : vector<8x128xf32>
    %235 = arith.addf %233, %234 : vector<8x128xf32>
    %236 = arith.mulf %187, %227 : vector<8x128xf32>
    %237 = arith.addf %235, %236 : vector<8x128xf32>
    %238 = arith.mulf %165, %207 : vector<8x128xf32>
    %239 = arith.mulf %187, %217 : vector<8x128xf32>
    %240 = arith.addf %238, %239 : vector<8x128xf32>
    %241 = arith.mulf %197, %227 : vector<8x128xf32>
    %242 = arith.addf %240, %241 : vector<8x128xf32>
    %243 = arith.maximumf %232, %237 : vector<8x128xf32>
    %244 = arith.maximumf %243, %242 : vector<8x128xf32>
    %245 = arith.index_cast %5 : i32 to index
    %c0_42 = arith.constant 0 : index
    %246 = vector.load %arg3[%245, %c0_42] : memref<8x128xf32, #tpu.memory_space<vmem>>, vector<8x128xf32>
    tpu.vector_store %arg3[%245, %c0_42], %244 {strides = array<i32>} : memref<8x128xf32, #tpu.memory_space<vmem>>, vector<8x128xf32>,
    %c1_i32 = arith.constant 1 : i32
    return
  }
  func.func @transform_0(%arg0: i32) -> (i32, i32, i32) {
    %c0_i32 = arith.constant 0 : i32
    %c0_i32_0 = arith.constant 0 : i32
    %c0_i32_1 = arith.constant 0 : i32
    return %c0_i32, %arg0, %c0_i32_0 : i32, i32, i32
  }
  func.func @transform_1(%arg0: i32) -> i32 {
    %c0_i32 = arith.constant 0 : i32
    %c0_i32_0 = arith.constant 0 : i32
    return %c0_i32 : i32
  }
  func.func @transform_2(%arg0: i32) -> (i32, i32) {
    %c0_i32 = arith.constant 0 : i32
    %c0_i32_0 = arith.constant 0 : i32
    return %arg0, %c0_i32 : i32, i32
  }
}

</mosaic_0001>

<llo_original>
// kernel: squeeze.1
$region0: #{squeeze.1}
  %s0 = inlined_call_operand.vmem [shape: f32[2,1,3,3], index: 0, kind: input, shape index: {}]
  %s1 = inlined_call_operand.vmem [shape: f32[2,9], index: 1, kind: output, shape index: {}]
  $region1: #{squeeze.1} parent=0
    #allocation0 [shape = 'u8[4096]{0}', space=vmem, size = 0x1000, scoped, tag = 'scoped mem for output reshape']
    #allocation1 [shape = 'u8[8192]{0}', space=vmem, size = 0x2000, scoped, tag = 'scoped mem for input reshape']
    %s3 = ssub.s32 16, 1
    %s4 = scalar_lea.vmem %s0, 4
    %v5 = vld [vmem:[%s4] sm:%s3]
    %s6 = scalar_lea.vmem [#allocation1], 8
    %7 = vst [vmem:[%s6] sm:%s3] %v5
    %v8 = vld [vmem:[%s0] sm:%s3]
    %9 = vst [vmem:[#allocation1] sm:%s3] %v8
    %s10 = smov 3
    %v11 = vld [vmem:[#allocation1] ss:$8 sm:%s10]
    %vm12 = vcmask 23552
    %13 = vst.msk [vmem:[#allocation0] sm:$0x3] %vm12, %v11
    %s14 = scalar_lea.vmem [#allocation1], 2
    %s15 = smov 3
    %v16 = vld [vmem:[%s14] ss:$8 sm:%s15]
    %17 = vrot.lane.b32.xlu0 %v16, 6
    %v18 = vpop.permute.xlu0 %17
    %vm19 = vcmask 72752
    %20 = vst.msk [vmem:[#allocation0] sm:$0x3] %vm19, %v18
    %s21 = scalar_lea.vmem [#allocation1], 1
    %s22 = smov 3
    %v23 = vld [vmem:[%s21] ss:$8 sm:%s22]
    %24 = vrot.lane.b32.xlu0 %v23, 3
    %v25 = vpop.permute.xlu0 %24
    %vm26 = vcmask 48152
    %27 = vst.msk [vmem:[#allocation0] sm:$0x3] %vm26, %v25
    %s29 = ssub.s32 4, 1
    %v30 = vld [vmem:[#allocation0] sm:%s29]
    %s32 = ssub.s32 4, 1
    %33 = vst [vmem:[%s1] sm:%s32] %v30

// kernel: framewise_hgnn_forward.1
$region0: #{framewise_hgnn_forward.1}
  #allocation0 [shape = 'u32[]', space=smem, size = 0x4, offset = 0x4, fixed_abs, tag = 'smem constant byte address 0x4 - core index']
  #allocation1 [shape = 'u32[72,128]{1,0:T(1,128)}', space=vmem, size = 0x9000, scoped, tag = 'internal scratch']
  %s0 = inlined_call_operand.vmem [shape: f32[9,8,128], index: 0, kind: input, shape index: {}]
  %s1 = inlined_call_operand.vmem [shape: f32[4], index: 1, kind: input, shape index: {}]
  %s2 = inlined_call_operand.vmem [shape: f32[8,128], index: 2, kind: output, shape index: {}]
  %s3 = sld [smem:[#allocation0]]
  $region22: #{framewise_hgnn_forward.1} parent=0
    _
  %s5 = ssub.s32 1, %s3
  %s6 = scalar_select 0, %s5, %s3
  $region1: #{framewise_hgnn_forward.1} parent=0
    #allocation2 [shape = 'u8[512]{0}', space=smem, size = 0x200, scoped, tag = 'input window, operand 1, single buffered']
    #allocation3 [shape = 's32[1]{0}', space=sflag, size = 0x4, scoped, tag = 'scoped memory for framewise_hgnn_forward.1']
    %7 = vsyncpa [#allocation3], 0
    // Predicated region
    $region2: #{framewise_hgnn_forward.1} parent=1 // pred_check
      _
    $region3: #{framewise_hgnn_forward.1} parent=1 // pred_check_branch
      %9 = sbr.rel (0) target = $region5
    $region4: #{framewise_hgnn_forward.1} parent=1 // pred_region
      _
    $region5: #{framewise_hgnn_forward.1} parent=1 // pred_fallthru
      _
    // Predicated region
    $region6: #{framewise_hgnn_forward.1} parent=1 // pred_check
      _
    $region7: #{framewise_hgnn_forward.1} parent=1 // pred_check_branch
      %11 = sbr.rel (0) target = $region9
    $region8: #{framewise_hgnn_forward.1} parent=1 // pred_region
      %13 = vsyncadd [#allocation3], 0
      %s15 = sshll.u32 %s1, 4
      %s16 = int_to_ptr.vmem [resolvable:$true] %s15
      %18 = dma.vmem_to_smem %s16, 16, [#allocation2], [#allocation3]
    $region9: #{framewise_hgnn_forward.1} parent=1 // pred_fallthru
      _
    // Predicated region
    $region10: #{framewise_hgnn_forward.1} parent=1 // pred_check
      _
    $region11: #{framewise_hgnn_forward.1} parent=1 // pred_check_branch
      %20 = sbr.rel (0) target = $region13
    $region12: #{framewise_hgnn_forward.1} parent=1 // pred_region
      %22 = dma.done [#allocation3], 16
    $region13: #{framewise_hgnn_forward.1} parent=1 // pred_fallthru
      _
    %23 = sfence
    %s24 = sld [smem:[#allocation2]]
    %s25 = sld [smem:[#allocation2 + $0x1]]
    %s26 = sld [smem:[#allocation2 + $0x2]]
    %s27 = sld [smem:[#allocation2 + $0x3]]
    %v28 = vld [vmem:[%s0] sm:$0xff]
    %s29 = sadd.s32 0, 8
    %s30 = scalar_lea.vmem %s0, %s29
    %v31 = vld [vmem:[%s30] sm:$0xff]
    %s32 = sadd.s32 0, 16
    %s33 = scalar_lea.vmem %s0, %s32
    %v34 = vld [vmem:[%s33] sm:$0xff]
    %s35 = sadd.s32 0, 24
    %s36 = scalar_lea.vmem %s0, %s35
    %v37 = vld [vmem:[%s36] sm:$0xff]
    %s38 = sadd.s32 0, 32
    %s39 = scalar_lea.vmem %s0, %s38
    %v40 = vld [vmem:[%s39] sm:$0xff]
    %s41 = sadd.s32 0, 40
    %s42 = scalar_lea.vmem %s0, %s41
    %v43 = vld [vmem:[%s42] sm:$0xff]
    %s44 = sadd.s32 0, 48
    %s45 = scalar_lea.vmem %s0, %s44
    %v46 = vld [vmem:[%s45] sm:$0xff]
    %s47 = sadd.s32 0, 56
    %s48 = scalar_lea.vmem %s0, %s47
    %v49 = vld [vmem:[%s48] sm:$0xff]
    %s50 = sadd.s32 0, 64
    %s51 = scalar_lea.vmem %s0, %s50
    %v52 = vld [vmem:[%s51] sm:$0xff]
    %v53 = vsub.f32 %v28, %v37
    %v54 = vsub.f32 %v31, %v40
    %v55 = vsub.f32 %v34, %v43
    %v56 = vmul.f32 %v53, %v53
    %v57 = vmul.f32 %v54, %v54
    %v58 = vadd.f32 %v56, %v57
    %v59 = vmul.f32 %v55, %v55
    %v60 = vadd.f32 %v58, %v59
    %v61 = vsub.f32 %v28, %v46
    %v62 = vsub.f32 %v31, %v49
    %v63 = vsub.f32 %v34, %v52
    %v64 = vmul.f32 %v61, %v61
    %v65 = vmul.f32 %v62, %v62
    %v66 = vadd.f32 %v64, %v65
    %v67 = vmul.f32 %v63, %v63
    %v68 = vadd.f32 %v66, %v67
    %v69 = vsub.f32 %v37, %v46
    %v70 = vsub.f32 %v40, %v49
    %v71 = vsub.f32 %v43, %v52
    %v72 = vmul.f32 %v69, %v69
    %v73 = vmul.f32 %v70, %v70
    %v74 = vadd.f32 %v72, %v73
    %v75 = vmul.f32 %v71, %v71
    %v76 = vadd.f32 %v74, %v75
    %v77 = vrsqrt.pop %v60
    %v78 = vmul.f32 %v77, %v60
    %v79 = vmul.f32 %v78, %v77
    %v80 = vmul.f32 0.5, %v79
    %v81 = vsub.f32 1.5, %v80
    %v82 = vmul.f32 %v77, %v81
    %v83 = vmul.f32 %v60, %v82
    %vm84 = vcmp.eq.f32.partialorder %v60, inf
    %v85 = vsel %vm84, %v60, %v83
    %vm86 = vcmp.eq.f32.partialorder %v60, 0.0
    %v87 = vand.u32 %v60, 2147483648
    %v88 = vsel %vm86, %v87, %v85
    %v89 = vrsqrt.pop %v68
    %v90 = vmul.f32 %v89, %v68
    %v91 = vmul.f32 %v90, %v89
    %v92 = vmul.f32 0.5, %v91
    %v93 = vsub.f32 1.5, %v92
    %v94 = vmul.f32 %v89, %v93
    %v95 = vmul.f32 %v68, %v94
    %vm96 = vcmp.eq.f32.partialorder %v68, inf
    %v97 = vsel %vm96, %v68, %v95
    %vm98 = vcmp.eq.f32.partialorder %v68, 0.0
    %v99 = vand.u32 %v68, 2147483648
    %v100 = vsel %vm98, %v99, %v97
    %v101 = vrsqrt.pop %v76
    %v102 = vmul.f32 %v101, %v76
    %v103 = vmul.f32 %v102, %v101
    %v104 = vmul.f32 0.5, %v103
    %v105 = vsub.f32 1.5, %v104
    %v106 = vmul.f32 %v101, %v105
    %v107 = vmul.f32 %v76, %v106
    %vm108 = vcmp.eq.f32.partialorder %v76, inf
    %v109 = vsel %vm108, %v76, %v107
    %vm110 = vcmp.eq.f32.partialorder %v76, 0.0
    %v111 = vand.u32 %v76, 2147483648
    %v112 = vsel %vm110, %v111, %v109
    %v113 = vadd.f32 %v88, %v100
    %v114 = vmul.f32 %v113, 0.33333334
    %v115 = vadd.f32 %v88, %v112
    %v116 = vmul.f32 %v115, 0.33333334
    %v117 = vadd.f32 %v100, %v112
    %v118 = vmul.f32 %v117, 0.33333334
    %v119 = vmul.f32 %v114, %v114
    %v120 = vadd.f32 %v119, 1e-12
    %v121 = vrcp.pop %v120
    %v122 = vmul.f32 %v120, %v121
    %v123 = vsub.f32 1.0, %v122
    %v124 = vmul.f32 %v121, %v123
    %v125 = vadd.f32 %v121, %v124
    %vm126 = vweird.f32 %v120
    %vm127 = vweird.f32 %v121
    %vm128 = vmor %vm126, %vm127
    %v129 = vsel %vm128, %v121, %v125
    %v130 = vand.u32 2147483647, %v120
    %vm131 = vcmp.eq.f32.partialorder %v130, 8.507059e+37
    %v132 = vand.u32 %v120, 2147483648
    %v133 = vor.u32 1.1754944e-38, %v132
    %v134 = vsel %vm131, %v133, %v129
    %v135 = vmul.f32 1.0, %v134
    %v136 = vmul.f32 %v116, %v116
    %v137 = vadd.f32 %v136, 1e-12
    %v138 = vrcp.pop %v137
    %v139 = vmul.f32 %v137, %v138
    %v140 = vsub.f32 1.0, %v139
    %v141 = vmul.f32 %v138, %v140
    %v142 = vadd.f32 %v138, %v141
    %vm143 = vweird.f32 %v137
    %vm144 = vweird.f32 %v138
    %vm145 = vmor %vm143, %vm144
    %v146 = vsel %vm145, %v138, %v142
    %v147 = vand.u32 2147483647, %v137
    %vm148 = vcmp.eq.f32.partialorder %v147, 8.507059e+37
    %v149 = vand.u32 %v137, 2147483648
    %v150 = vor.u32 1.1754944e-38, %v149
    %v151 = vsel %vm148, %v150, %v146
    %v152 = vmul.f32 1.0, %v151
    %v153 = vmul.f32 %v118, %v118
    %v154 = vadd.f32 %v153, 1e-12
    %v155 = vrcp.pop %v154
    %v156 = vmul.f32 %v154, %v155
    %v157 = vsub.f32 1.0, %v156
    %v158 = vmul.f32 %v155, %v157
    %v159 = vadd.f32 %v155, %v158
    %vm160 = vweird.f32 %v154
    %vm161 = vweird.f32 %v155
    %vm162 = vmor %vm160, %vm161
    %v163 = vsel %vm162, %v155, %v159
    %v164 = vand.u32 2147483647, %v154
    %vm165 = vcmp.eq.f32.partialorder %v164, 8.507059e+37
    %v166 = vand.u32 %v154, 2147483648
    %v167 = vor.u32 1.1754944e-38, %v166
    %v168 = vsel %vm165, %v167, %v163
    %v169 = vmul.f32 1.0, %v168
    %v170 = vsub.f32 0.0, %v60
    %v171 = vmul.f32 %v170, %v152
    %v172 = vmul.f32 %v171, 1.442695
    %v173 = vpow.pop %v172
    %v174 = vsub.f32 0.0, %v68
    %v175 = vmul.f32 %v174, %v169
    %v176 = vmul.f32 %v175, 1.442695
    %v177 = vpow.pop %v176
    %v178 = vmul.f32 %v170, %v135
    %v179 = vmul.f32 %v178, 1.442695
    %v180 = vpow.pop %v179
    %v181 = vsub.f32 0.0, %v76
    %v182 = vmul.f32 %v181, %v169
    %v183 = vmul.f32 %v182, 1.442695
    %v184 = vpow.pop %v183
    %v185 = vmul.f32 %v174, %v135
    %v186 = vmul.f32 %v185, 1.442695
    %v187 = vpow.pop %v186
    %v188 = vmul.f32 %v181, %v152
    %v189 = vmul.f32 %v188, 1.442695
    %v190 = vpow.pop %v189
    %v191 = vadd.f32 %v173, 1.0
    %v192 = vadd.f32 %v191, %v177
    %v193 = vadd.f32 %v180, 1.0
    %v194 = vadd.f32 %v193, %v184
    %v195 = vadd.f32 %v187, %v190
    %v196 = vadd.f32 %v195, 1.0
    %v197 = vadd.f32 %v193, %v187
    %v198 = vadd.f32 %v191, %v190
    %v199 = vadd.f32 %v177, %v184
    %v200 = vadd.f32 %v199, 1.0
    %v201 = vrcp.pop %v197
    %v202 = vmul.f32 %v197, %v201
    %v203 = vsub.f32 1.0, %v202
    %v204 = vmul.f32 %v201, %v203
    %v205 = vadd.f32 %v201, %v204
    %vm206 = vweird.f32 %v197
    %vm207 = vweird.f32 %v201
    %vm208 = vmor %vm206, %vm207
    %v209 = vsel %vm208, %v201, %v205
    %v210 = vand.u32 2147483647, %v197
    %vm211 = vcmp.eq.f32.partialorder %v210, 8.507059e+37
    %v212 = vand.u32 %v197, 2147483648
    %v213 = vor.u32 1.1754944e-38, %v212
    %v214 = vsel %vm211, %v213, %v209
    %v215 = vrcp.pop %v198
    %v216 = vmul.f32 %v198, %v215
    %v217 = vsub.f32 1.0, %v216
    %v218 = vmul.f32 %v215, %v217
    %v219 = vadd.f32 %v215, %v218
    %vm220 = vweird.f32 %v198
    %vm221 = vweird.f32 %v215
    %vm222 = vmor %vm220, %vm221
    %v223 = vsel %vm222, %v215, %v219
    %v224 = vand.u32 2147483647, %v198
    %vm225 = vcmp.eq.f32.partialorder %v224, 8.507059e+37
    %v226 = vand.u32 %v198, 2147483648
    %v227 = vor.u32 1.1754944e-38, %v226
    %v228 = vsel %vm225, %v227, %v223
    %v229 = vrcp.pop %v200
    %v230 = vmul.f32 %v200, %v229
    %v231 = vsub.f32 1.0, %v230
    %v232 = vmul.f32 %v229, %v231
    %v233 = vadd.f32 %v229, %v232
    %vm234 = vweird.f32 %v200
    %vm235 = vweird.f32 %v229
    %vm236 = vmor %vm234, %vm235
    %v237 = vsel %vm236, %v229, %v233
    %v238 = vand.u32 2147483647, %v200
    %vm239 = vcmp.eq.f32.partialorder %v238, 8.507059e+37
    %v240 = vand.u32 %v200, 2147483648
    %v241 = vor.u32 1.1754944e-38, %v240
    %v242 = vsel %vm239, %v241, %v237
    %v243 = vrsqrt.pop %v192
    %v244 = vmul.f32 %v243, %v192
    %v245 = vmul.f32 %v244, %v243
    %v246 = vmul.f32 0.5, %v245
    %v247 = vsub.f32 1.5, %v246
    %v248 = vmul.f32 %v243, %v247
    %vm249 = vweird.f32 %v192
    %vm250 = vweird.f32 %v243
    %vm251 = vmor %vm249, %vm250
    %v252 = vsel %vm251, %v243, %v248
    %v253 = vrsqrt.pop %v194
    %v254 = vmul.f32 %v253, %v194
    %v255 = vmul.f32 %v254, %v253
    %v256 = vmul.f32 0.5, %v255
    %v257 = vsub.f32 1.5, %v256
    %v258 = vmul.f32 %v253, %v257
    %vm259 = vweird.f32 %v194
    %vm260 = vweird.f32 %v253
    %vm261 = vmor %vm259, %vm260
    %v262 = vsel %vm261, %v253, %v258
    %v263 = vrsqrt.pop %v196
    %v264 = vmul.f32 %v263, %v196
    %v265 = vmul.f32 %v264, %v263
    %v266 = vmul.f32 0.5, %v265
    %v267 = vsub.f32 1.5, %v266
    %v268 = vmul.f32 %v263, %v267
    %vm269 = vweird.f32 %v196
    %vm270 = vweird.f32 %v263
    %vm271 = vmor %vm269, %vm270
    %v272 = vsel %vm271, %v263, %v268
    %v273 = vmul.f32 %v173, %v173
    %v274 = vmul.f32 %v273, %v228
    %v275 = vadd.f32 %v214, %v274
    %v276 = vmul.f32 %v177, %v177
    %v277 = vmul.f32 %v276, %v242
    %v278 = vadd.f32 %v275, %v277
    %v279 = vmul.f32 %v252, %v252
    %v280 = vmul.f32 %v279, %v278
    %v281 = vmul.f32 %v180, %v214
    %v282 = vmul.f32 %v173, %v228
    %v283 = vadd.f32 %v281, %v282
    %v284 = vmul.f32 %v177, %v184
    %v285 = vmul.f32 %v284, %v242
    %v286 = vadd.f32 %v283, %v285
    %v287 = vmul.f32 %v252, %v262
    %v288 = vmul.f32 %v287, %v286
    %v289 = vmul.f32 %v187, %v214
    %v290 = vmul.f32 %v173, %v190
    %v291 = vmul.f32 %v290, %v228
    %v292 = vadd.f32 %v289, %v291
    %v293 = vmul.f32 %v177, %v242
    %v294 = vadd.f32 %v292, %v293
    %v295 = vmul.f32 %v252, %v272
    %v296 = vmul.f32 %v295, %v294
    %v297 = vmul.f32 %v180, %v180
    %v298 = vmul.f32 %v297, %v214
    %v299 = vadd.f32 %v298, %v228
    %v300 = vmul.f32 %v184, %v184
    %v301 = vmul.f32 %v300, %v242
    %v302 = vadd.f32 %v299, %v301
    %v303 = vmul.f32 %v262, %v262
    %v304 = vmul.f32 %v303, %v302
    %v305 = vmul.f32 %v180, %v187
    %v306 = vmul.f32 %v305, %v214
    %v307 = vmul.f32 %v190, %v228
    %v308 = vadd.f32 %v306, %v307
    %v309 = vmul.f32 %v184, %v242
    %v310 = vadd.f32 %v308, %v309
    %v311 = vmul.f32 %v262, %v272
    %v312 = vmul.f32 %v311, %v310
    %v313 = vmul.f32 %v187, %v187
    %v314 = vmul.f32 %v313, %v214
    %v315 = vmul.f32 %v190, %v190
    %v316 = vmul.f32 %v315, %v228
    %v317 = vadd.f32 %v314, %v316
    %v318 = vadd.f32 %v317, %v242
    %v319 = vmul.f32 %v272, %v272
    %v320 = vmul.f32 %v319, %v318
    %v321 = vstv %s24
    %v322 = vmul.f32 %v280, %v321
    %v323 = vstv %s25
    %v324 = vmul.f32 %v288, %v323
    %v325 = vadd.f32 %v322, %v324
    %v326 = vstv %s26
    %v327 = vmul.f32 %v296, %v326
    %v328 = vadd.f32 %v325, %v327
    %v329 = vstv %s27
    %v330 = vadd.f32 %v328, %v329
    %v331 = vmul.f32 %v288, %v321
    %v332 = vmul.f32 %v304, %v323
    %v333 = vadd.f32 %v331, %v332
    %v334 = vmul.f32 %v312, %v326
    %v335 = vadd.f32 %v333, %v334
    %v336 = vadd.f32 %v335, %v329
    %v337 = vmul.f32 %v296, %v321
    %v338 = vmul.f32 %v312, %v323
    %v339 = vadd.f32 %v337, %v338
    %v340 = vmul.f32 %v320, %v326
    %v341 = vadd.f32 %v339, %v340
    %v342 = vadd.f32 %v341, %v329
    %v343 = vmul.f32 %v280, %v330
    %v344 = vmul.f32 %v288, %v336
    %v345 = vadd.f32 %v343, %v344
    %v346 = vmul.f32 %v296, %v342
    %v347 = vadd.f32 %v345, %v346
    %v348 = vmul.f32 %v288, %v330
    %v349 = vmul.f32 %v304, %v336
    %v350 = vadd.f32 %v348, %v349
    %v351 = vmul.f32 %v312, %v342
    %v352 = vadd.f32 %v350, %v351
    %v353 = vmul.f32 %v296, %v330
    %v354 = vmul.f32 %v312, %v336
    %v355 = vadd.f32 %v353, %v354
    %v356 = vmul.f32 %v320, %v342
    %v357 = vadd.f32 %v355, %v356
    %v358 = vmax.f32 %v347, %v352
    %v359 = vmax.f32 %v358, %v357
    %360 = vst [vmem:[%s2] sm:$0xff] %v359
    // Predicated region
    $region14: #{framewise_hgnn_forward.1} parent=1 // pred_check
      _
    $region15: #{framewise_hgnn_forward.1} parent=1 // pred_check_branch
      %362 = sbr.rel (0) target = $region17
    $region16: #{framewise_hgnn_forward.1} parent=1 // pred_region
      _
    $region17: #{framewise_hgnn_forward.1} parent=1 // pred_fallthru
      _
    // Predicated region
    $region18: #{framewise_hgnn_forward.1} parent=1 // pred_check
      _
    $region19: #{framewise_hgnn_forward.1} parent=1 // pred_check_branch
      %364 = sbr.rel (0) target = $region21
    $region20: #{framewise_hgnn_forward.1} parent=1 // pred_region
      _
    $region21: #{framewise_hgnn_forward.1} parent=1 // pred_fallthru
      _
    %365 = vsyncpa [#allocation3], 1

</llo_original>
